<compile_context>
chip_gen: v7x
topology: tpu7x:2x2x1
jax: 0.10.0
libtpu: 0.0.40
codegen_flags: <defaults>
</compile_context>

<pallas_src>
import jax
import jax.numpy as jnp
from jax.experimental import pallas as pl
from jax.experimental.pallas import tpu as pltpu

BN_EPS = 1e-5

_DEFAULT_SCOPED_VMEM = 16 * 1024 * 1024     # v5e scoped default (v6e/v7x: 32 MiB)
_VMEM_CAP = 60 * 1024 * 1024                # stay under v7x physical 64 MiB


def _vmem_limit_bytes(estimate):
    """Only raise the scoped-VMEM limit when the default would be too small."""
    if estimate <= _DEFAULT_SCOPED_VMEM - (2 << 20):
        return None
    return int(min(estimate + (4 << 20), _VMEM_CAP))


def _pick_block_rows(batch, requested):
    """Largest row tile <= requested that divides batch (multiple of 8)."""
    requested = max(8, min(requested, batch))
    if batch % requested == 0 and requested % 8 == 0:
        return requested
    for tb in range(requested, 7, -1):
        if batch % tb == 0 and tb % 8 == 0:
            return tb
    return batch            # single tile; block == full array dim is always legal


# ------------------------------ kernels ----------------------------------- #

def _make_resdnn_bn_kernel(n_layers, batch, eps):
    """Gridded (n_layers + 1, n_tiles) kernel with exact whole-batch BN."""
    inv_b = 1.0 / float(batch)

    def kernel(x_ref, w_ref, g_ref, be_ref, o_ref,
               y_ref, sum_ref, ssq_ref, sc_ref, sh_ref):
        # Sweep l in [0, n_layers): layer l's matmul + BN-stat accumulation,
        # fused with layer (l-1)'s BN + ReLU epilogue (which produces the
        # matmul input). Sweep l == n_layers: last layer's epilogue + residual.
        l = pl.program_id(0)
        t = pl.program_id(1)

        # Finalize the previous layer's batch statistics once per sweep:
        # full-batch sums -> folded scale/shift (training-mode BatchNorm1d,
        # biased variance). Keeps exact semantics under batch tiling.
        @pl.when(jnp.logical_and(t == 0, l > 0))
        def _():
            prev = jnp.maximum(l - 1, 0)
            mean = sum_ref[...] * inv_b
            var = ssq_ref[...] * inv_b - mean * mean       # one-pass stats
            scale = g_ref[prev] * jax.lax.rsqrt(var + eps)
            sc_ref[...] = scale
            sh_ref[...] = be_ref[prev] - mean * scale

        # Reset accumulators at the start of every sweep.
        @pl.when(t == 0)
        def _():
            sum_ref[...] = jnp.zeros_like(sum_ref)
            ssq_ref[...] = jnp.zeros_like(ssq_ref)

        x_tile = x_ref[...]                                # (TB, N) f32
        # Folded BN + ReLU epilogue of the previous layer (VPU work that
        # overlaps the MXU matmul below).
        a_prev = jnp.maximum(y_ref[t] * sc_ref[...] + sh_ref[...], 0.0)
        # Layer 0 consumes x itself (y/sc/sh hold don't-care data then; the
        # select discards them).
        a = jnp.where(l == 0, x_tile, a_prev)

        # Linear pass (layers 0..n_layers-1): bf16 MXU matmul, f32 accumulate.
        # Weights stay in PyTorch (out, in) layout; contracting dim 1 of both
        # operands is a native trans_b matmul.
        @pl.when(l < n_layers)
        def _():
            lw = jnp.minimum(l, n_layers - 1)
            z = jax.lax.dot_general(
                a.astype(jnp.bfloat16), w_ref[lw],
                dimension_numbers=(((1,), (1,)), ((), ())),
                preferred_element_type=jnp.float32)
            y_ref[t] = z
            # Linear bias omitted: BN mean subtraction cancels it exactly.
            sum_ref[...] += jnp.sum(z, axis=0, keepdims=True)
            ssq_ref[...] += jnp.sum(z * z, axis=0, keepdims=True)

        # Final sweep: a_prev is BN+ReLU of the last layer -> residual + store.
        @pl.when(l == n_layers)
        def _():
            o_ref[...] = (a_prev + x_tile).astype(o_ref.dtype)

    return kernel


def _make_resdnn_nobn_kernel(n_layers):
    """bn=False: no cross-tile coupling -> fully parallel single sweep."""
    def kernel(x_ref, w_ref, b_ref, o_ref):
        x_tile = x_ref[...]
        h = x_tile
        for l in range(n_layers):            # static unroll (small layer count)
            z = jax.lax.dot_general(
                h.astype(jnp.bfloat16), w_ref[l],
                dimension_numbers=(((1,), (1,)), ((), ())),
                preferred_element_type=jnp.float32)
            h = jnp.maximum(z + b_ref[l], 0.0)
        o_ref[...] = (h + x_tile).astype(o_ref.dtype)
    return kernel


# ------------------------------ wrapper ------------------------------------ #

def resdnn_block_pallas(x, weights, biases, gammas, betas, *,
                        use_bn=True, block_rows=512):
    """x: (B, N); weights: (L, N, N) PyTorch Linear layout (out, in) per layer."""
    batch, n = x.shape
    n_layers = weights.shape[0]
    tb = _pick_block_rows(batch, block_rows)
    n_tiles = batch // tb

    x32 = x.astype(jnp.float32)
    w_bf16 = weights.astype(jnp.bfloat16)    # native MXU operand dtype

    if use_bn:
        g = gammas.reshape(n_layers, 1, n).astype(jnp.float32)
        be = betas.reshape(n_layers, 1, n).astype(jnp.float32)

        est = (batch * n * 4                            # resident pre-activations
               + 4 * 2 * tb * n * 4                     # double-buffered x/out tiles
               + 2 * (n_layers * n * n * 2 + 2 * n_layers * n * 4)
               + (1 << 20))
        return pl.pallas_call(
            _make_resdnn_bn_kernel(n_layers, batch, BN_EPS),
            out_shape=jax.ShapeDtypeStruct((batch, n), jnp.float32),
            grid=(n_layers + 1, n_tiles),
            in_specs=[
                pl.BlockSpec((tb, n), lambda l, t: (t, 0)),               # x tiles
                pl.BlockSpec((n_layers, n, n), lambda l, t: (0, 0, 0)),   # weights
                pl.BlockSpec((n_layers, 1, n), lambda l, t: (0, 0, 0)),   # gamma
                pl.BlockSpec((n_layers, 1, n), lambda l, t: (0, 0, 0)),   # beta
            ],
            out_specs=pl.BlockSpec((tb, n), lambda l, t: (t, 0)),
            scratch_shapes=[
                pltpu.VMEM((n_tiles, tb, n), jnp.float32),  # current pre-activations
                pltpu.VMEM((1, n), jnp.float32),            # sum
                pltpu.VMEM((1, n), jnp.float32),            # sum of squares
                pltpu.VMEM((1, n), jnp.float32),            # folded BN scale
                pltpu.VMEM((1, n), jnp.float32),            # folded BN shift
            ],
            compiler_params=pltpu.CompilerParams(
                # Cross-tile BN statistics force sequential grid axes.
                dimension_semantics=("arbitrary", "arbitrary"),
                vmem_limit_bytes=_vmem_limit_bytes(est)),
        )(x32, w_bf16, g, be)

    b = biases.reshape(n_layers, 1, n).astype(jnp.float32)
    est = (4 * 2 * tb * n * 4
           + 2 * (n_layers * n * n * 2 + n_layers * n * 4) + (1 << 20))
    return pl.pallas_call(
        _make_resdnn_nobn_kernel(n_layers),
        out_shape=jax.ShapeDtypeStruct((batch, n), jnp.float32),
        grid=(n_tiles,),
        in_specs=[
            pl.BlockSpec((tb, n), lambda t: (t, 0)),
            pl.BlockSpec((n_layers, n, n), lambda t: (0, 0, 0)),
            pl.BlockSpec((n_layers, 1, n), lambda t: (0, 0, 0)),
        ],
        out_specs=pl.BlockSpec((tb, n), lambda t: (t, 0)),
        compiler_params=pltpu.CompilerParams(
            dimension_semantics=("parallel",),      # megacore-splittable on v7x
            vmem_limit_bytes=_vmem_limit_bytes(est)),
    )(x32, w_bf16, b)


# --------------------------- pure-JAX reference ----------------------------- #

def resdnn_block_reference(x, weights, biases, gammas, betas, *,
                           use_bn=True, matmul_dtype=jnp.float32):
    h = x
    for l in range(weights.shape[0]):
        z = jnp.dot(h.astype(matmul_dtype), weights[l].T.astype(matmul_dtype),
                    preferred_element_type=jnp.float32,
                    precision=jax.lax.Precision.HIGHEST)
        z = z + biases[l]
        if use_bn:
            mean = jnp.mean(z, axis=0, keepdims=True)
            var = jnp.mean((z - mean) ** 2, axis=0, keepdims=True)
            z = (z - mean) * jax.lax.rsqrt(var + BN_EPS)
            z = z * gammas[l] + betas[l]
        h = jnp.maximum(z, 0.0)
    return h + x


# ---------------------------------- main ------------------------------------ #

if __name__ == "__main__":
    key = jax.random.PRNGKey(0)

    # ResDNNBlock(n_layers=3, n_neurons=128, bn=True, activation=ReLU).
    # n_neurons=128 keeps the feature axis lane-dense. The small batch is
    # split into 4 row tiles so the gridded pipeline and the cross-tile BN
    # statistics are actually exercised; production batches would use the
    # default 512-row tiles.
    n_layers, n_neurons, batch = 3, 128, 128
    block_rows = 32
    ks = jax.random.split(key, 5)

    x = jax.random.normal(ks[0], (batch, n_neurons), jnp.float32)
    weights = jax.random.normal(
        ks[1], (n_layers, n_neurons, n_neurons), jnp.float32) / jnp.sqrt(n_neurons)
    biases = 0.1 * jax.random.normal(ks[2], (n_layers, n_neurons), jnp.float32)
    gammas = 1.0 + 0.1 * jax.random.normal(ks[3], (n_layers, n_neurons), jnp.float32)
    betas = 0.1 * jax.random.normal(ks[4], (n_layers, n_neurons), jnp.float32)

    # ---- bn=True path (training-mode batch statistics, exact) ----
    y = jax.block_until_ready(resdnn_block_pallas(
        x, weights, biases, gammas, betas, use_bn=True, block_rows=block_rows))
    assert y.shape == (batch, n_neurons), y.shape

    y_match = resdnn_block_reference(x, weights, biases, gammas, betas,
                                     use_bn=True, matmul_dtype=jnp.bfloat16)
    y_f32 = resdnn_block_reference(x, weights, biases, gammas, betas,
                                   use_bn=True, matmul_dtype=jnp.float32)
    # Same bf16 operand rounding as the kernel -> checks the kernel logic.
    assert jnp.allclose(y, y_match, atol=1e-2, rtol=1e-2), \
        float(jnp.max(jnp.abs(y - y_match)))
    # Against the full-f32 reference: only bounded bf16-operand error remains.
    assert jnp.allclose(y, y_f32, atol=6e-2, rtol=6e-2), \
        float(jnp.max(jnp.abs(y - y_f32)))

    # ---- bn=False path (Identity instead of BatchNorm1d) ----
    y2 = jax.block_until_ready(resdnn_block_pallas(
        x, weights, biases, gammas, betas, use_bn=False, block_rows=block_rows))
    y2_match = resdnn_block_reference(x, weights, biases, gammas, betas,
                                      use_bn=False, matmul_dtype=jnp.bfloat16)
    assert jnp.allclose(y2, y2_match, atol=1e-2, rtol=1e-2), \
        float(jnp.max(jnp.abs(y2 - y2_match)))

    print("KERNEL_OK")
</pallas_src>

<mosaic_0001>
module attributes {stable_mosaic.version = 11 : i64} {
  func.func @kernel(%arg0: i32, %arg1: i32, %arg2: memref<32x128xf32, #tpu.memory_space<vmem>>, %arg3: memref<3x128x128xbf16, #tpu.memory_space<vmem>>, %arg4: memref<3x1x128xf32, #tpu.memory_space<vmem>>, %arg5: memref<3x1x128xf32, #tpu.memory_space<vmem>>, %arg6: memref<32x128xf32, #tpu.memory_space<vmem>>, %arg7: memref<4x32x128xf32, #tpu.memory_space<vmem>>, %arg8: memref<1x128xf32, #tpu.memory_space<vmem>>, %arg9: memref<1x128xf32, #tpu.memory_space<vmem>>, %arg10: memref<1x128xf32, #tpu.memory_space<vmem>>, %arg11: memref<1x128xf32, #tpu.memory_space<vmem>>) attributes {dimension_semantics = [#tpu.dimension_semantics<arbitrary>, #tpu.dimension_semantics<arbitrary>], iteration_bounds = array<i64: 4, 4>, scalar_prefetch = 0 : i64, scratch_operands = 5 : i64, tpu.core_type = #tpu.core_type<tc>, window_params = [{transform_indices = @transform_0, window_bounds = array<i64: 32, 128>}, {pipeline_mode = #tpu.pipeline_mode<synchronous>, transform_indices = @transform_1, window_bounds = array<i64: 3, 128, 128>}, {pipeline_mode = #tpu.pipeline_mode<synchronous>, transform_indices = @transform_2, window_bounds = array<i64: 3, 1, 128>}, {pipeline_mode = #tpu.pipeline_mode<synchronous>, transform_indices = @transform_3, window_bounds = array<i64: 3, 1, 128>}, {transform_indices = @transform_4, window_bounds = array<i64: 32, 128>}]} {
    %c0_i32 = arith.constant 0 : i32
    %0 = arith.cmpi eq, %arg1, %c0_i32 : i32
    %c0_i32_0 = arith.constant 0 : i32
    %1 = arith.cmpi sgt, %arg0, %c0_i32_0 : i32
    %2 = arith.andi %0, %1 : i1
    %3 = arith.extui %2 : i1 to i32
    %c0_i32_1 = arith.constant 0 : i32
    %4 = arith.cmpi ne, %3, %c0_i32_1 : i32
    scf.if %4 {
      %c1_i32 = arith.constant 1 : i32
      %28 = arith.subi %arg0, %c1_i32 : i32
      %c0_i32_15 = arith.constant 0 : i32
      %29 = arith.maxsi %28, %c0_i32_15 : i32
      %c0_16 = arith.constant 0 : index
      %c0_17 = arith.constant 0 : index
      %30 = vector.load %arg8[%c0_16, %c0_17] : memref<1x128xf32, #tpu.memory_space<vmem>>, vector<1x128xf32>
      %cst_18 = arith.constant 7.812500e-03 : f32
      %31 = vector.broadcast %cst_18 : f32 to vector<1x128xf32>
      %32 = arith.mulf %30, %31 : vector<1x128xf32>
      %c0_19 = arith.constant 0 : index
      %c0_20 = arith.constant 0 : index
      %33 = vector.load %arg9[%c0_19, %c0_20] : memref<1x128xf32, #tpu.memory_space<vmem>>, vector<1x128xf32>
      %cst_21 = arith.constant 7.812500e-03 : f32
      %34 = vector.broadcast %cst_21 : f32 to vector<1x128xf32>
      %35 = arith.mulf %33, %34 : vector<1x128xf32>
      %36 = arith.mulf %32, %32 : vector<1x128xf32>
      %37 = arith.subf %35, %36 : vector<1x128xf32>
      %38 = arith.index_cast %29 : i32 to index
      %c0_22 = arith.constant 0 : index
      %c0_23 = arith.constant 0 : index
      %39 = vector.load %arg4[%38, %c0_22, %c0_23] : memref<3x1x128xf32, #tpu.memory_space<vmem>>, vector<1x1x128xf32>
      %40 = vector.shape_cast %39 : vector<1x1x128xf32> to vector<1x128xf32>
      %cst_24 = arith.constant 9.99999974E-6 : f32
      %41 = vector.broadcast %cst_24 : f32 to vector<1x128xf32>
      %42 = arith.addf %37, %41 : vector<1x128xf32>
      %43 = math.rsqrt %42 : vector<1x128xf32>
      %44 = arith.mulf %40, %43 : vector<1x128xf32>
      %c0_25 = arith.constant 0 : index
      %c0_26 = arith.constant 0 : index
      %45 = vector.load %arg10[%c0_25, %c0_26] : memref<1x128xf32, #tpu.memory_space<vmem>>, vector<1x128xf32>
      tpu.vector_store %arg10[%c0_25, %c0_26], %44 {strides = array<i32>} : memref<1x128xf32, #tpu.memory_space<vmem>>, vector<1x128xf32>,
      %46 = arith.index_cast %29 : i32 to index
      %c0_27 = arith.constant 0 : index
      %c0_28 = arith.constant 0 : index
      %47 = vector.load %arg5[%46, %c0_27, %c0_28] : memref<3x1x128xf32, #tpu.memory_space<vmem>>, vector<1x1x128xf32>
      %48 = vector.shape_cast %47 : vector<1x1x128xf32> to vector<1x128xf32>
      %49 = arith.mulf %32, %44 : vector<1x128xf32>
      %50 = arith.subf %48, %49 : vector<1x128xf32>
      %c0_29 = arith.constant 0 : index
      %c0_30 = arith.constant 0 : index
      %51 = vector.load %arg11[%c0_29, %c0_30] : memref<1x128xf32, #tpu.memory_space<vmem>>, vector<1x128xf32>
      tpu.vector_store %arg11[%c0_29, %c0_30], %50 {strides = array<i32>} : memref<1x128xf32, #tpu.memory_space<vmem>>, vector<1x128xf32>,
    } else {
    }
    %c0_i32_2 = arith.constant 0 : i32
    %5 = arith.cmpi eq, %arg1, %c0_i32_2 : i32
    %6 = arith.extui %5 : i1 to i32
    %c0_i32_3 = arith.constant 0 : i32
    %7 = arith.cmpi ne, %6, %c0_i32_3 : i32
    scf.if %7 {
      %cst_15 = arith.constant 0.000000e+00 : f32
      %28 = vector.broadcast %cst_15 : f32 to vector<1x128xf32>
      %c0_16 = arith.constant 0 : index
      %c0_17 = arith.constant 0 : index
      %29 = vector.load %arg8[%c0_16, %c0_17] : memref<1x128xf32, #tpu.memory_space<vmem>>, vector<1x128xf32>
      tpu.vector_store %arg8[%c0_16, %c0_17], %28 {strides = array<i32>} : memref<1x128xf32, #tpu.memory_space<vmem>>, vector<1x128xf32>,
      %cst_18 = arith.constant 0.000000e+00 : f32
      %30 = vector.broadcast %cst_18 : f32 to vector<1x128xf32>
      %c0_19 = arith.constant 0 : index
      %c0_20 = arith.constant 0 : index
      %31 = vector.load %arg9[%c0_19, %c0_20] : memref<1x128xf32, #tpu.memory_space<vmem>>, vector<1x128xf32>
      tpu.vector_store %arg9[%c0_19, %c0_20], %30 {strides = array<i32>} : memref<1x128xf32, #tpu.memory_space<vmem>>, vector<1x128xf32>,
    } else {
    }
    %c0 = arith.constant 0 : index
    %c0_4 = arith.constant 0 : index
    %8 = vector.load %arg2[%c0, %c0_4] : memref<32x128xf32, #tpu.memory_space<vmem>>, vector<32x128xf32>
    %9 = arith.index_cast %arg1 : i32 to index
    %c0_5 = arith.constant 0 : index
    %c0_6 = arith.constant 0 : index
    %10 = vector.load %arg7[%9, %c0_5, %c0_6] : memref<4x32x128xf32, #tpu.memory_space<vmem>>, vector<1x32x128xf32>
    %11 = vector.shape_cast %10 : vector<1x32x128xf32> to vector<32x128xf32>
    %c0_7 = arith.constant 0 : index
    %c0_8 = arith.constant 0 : index
    %12 = vector.load %arg10[%c0_7, %c0_8] : memref<1x128xf32, #tpu.memory_space<vmem>>, vector<1x128xf32>
    %13 = vector.broadcast %12 : vector<1x128xf32> to vector<32x128xf32>
    %14 = arith.mulf %11, %13 : vector<32x128xf32>
    %c0_9 = arith.constant 0 : index
    %c0_10 = arith.constant 0 : index
    %15 = vector.load %arg11[%c0_9, %c0_10] : memref<1x128xf32, #tpu.memory_space<vmem>>, vector<1x128xf32>
    %16 = vector.broadcast %15 : vector<1x128xf32> to vector<32x128xf32>
    %17 = arith.addf %14, %16 : vector<32x128xf32>
    %cst = arith.constant 0.000000e+00 : f32
    %18 = vector.broadcast %cst : f32 to vector<32x128xf32>
    %19 = arith.maximumf %17, %18 : vector<32x128xf32>
    %c0_i32_11 = arith.constant 0 : i32
    %20 = arith.cmpi eq, %arg0, %c0_i32_11 : i32
    %21 = arith.select %20, %8, %19 : vector<32x128xf32>
    %c3_i32 = arith.constant 3 : i32
    %22 = arith.cmpi slt, %arg0, %c3_i32 : i32
    %23 = arith.extui %22 : i1 to i32
    %c0_i32_12 = arith.constant 0 : i32
    %24 = arith.cmpi ne, %23, %c0_i32_12 : i32
    scf.if %24 {
      %c2_i32 = arith.constant 2 : i32
      %28 = arith.minsi %arg0, %c2_i32 : i32
      %29 = arith.truncf %21 : vector<32x128xf32> to vector<32x128xbf16>
      %30 = arith.index_cast %28 : i32 to index
      %c0_15 = arith.constant 0 : index
      %c0_16 = arith.constant 0 : index
      %31 = vector.load %arg3[%30, %c0_15, %c0_16] : memref<3x128x128xbf16, #tpu.memory_space<vmem>>, vector<1x128x128xbf16>
      %32 = vector.shape_cast %31 : vector<1x128x128xbf16> to vector<128x128xbf16>
      %cst_17 = arith.constant dense<0.000000e+00> : vector<32x128xf32>
      %33 = tpu.matmul %29, %32, %cst_17 {dimension_numbers = #tpu.dot_dimension_numbers<[1], [1], [0], [0], [0, 0, 1, 0], [], []>} : vector<32x128xbf16>, vector<128x128xbf16>, vector<32x128xf32> -> vector<32x128xf32>
      %34 = arith.index_cast %arg1 : i32 to index
      %c0_18 = arith.constant 0 : index
      %c0_19 = arith.constant 0 : index
      %35 = vector.load %arg7[%34, %c0_18, %c0_19] : memref<4x32x128xf32, #tpu.memory_space<vmem>>, vector<1x32x128xf32>
      %36 = vector.shape_cast %35 : vector<1x32x128xf32> to vector<32x128xf32>
      %37 = vector.shape_cast %33 : vector<32x128xf32> to vector<1x32x128xf32>
      tpu.vector_store %arg7[%34, %c0_18, %c0_19], %37 {strides = array<i32>} : memref<4x32x128xf32, #tpu.memory_space<vmem>>, vector<1x32x128xf32>,
      %c0_20 = arith.constant 0 : index
      %c0_21 = arith.constant 0 : index
      %38 = vector.load %arg8[%c0_20, %c0_21] : memref<1x128xf32, #tpu.memory_space<vmem>>, vector<1x128xf32>
      %cst_22 = arith.constant dense<0.000000e+00> : vector<128xf32>
      %39 = vector.multi_reduction <add>, %33, %cst_22 [0] : vector<32x128xf32> to vector<128xf32>
      %40 = vector.shape_cast %39 : vector<128xf32> to vector<1x128xf32>
      %41 = arith.addf %38, %40 : vector<1x128xf32>
      %c0_23 = arith.constant 0 : index
      %c0_24 = arith.constant 0 : index
      %42 = vector.load %arg8[%c0_23, %c0_24] : memref<1x128xf32, #tpu.memory_space<vmem>>, vector<1x128xf32>
      tpu.vector_store %arg8[%c0_23, %c0_24], %41 {strides = array<i32>} : memref<1x128xf32, #tpu.memory_space<vmem>>, vector<1x128xf32>,
      %c0_25 = arith.constant 0 : index
      %c0_26 = arith.constant 0 : index
      %43 = vector.load %arg9[%c0_25, %c0_26] : memref<1x128xf32, #tpu.memory_space<vmem>>, vector<1x128xf32>
      %44 = arith.mulf %33, %33 : vector<32x128xf32>
      %cst_27 = arith.constant dense<0.000000e+00> : vector<128xf32>
      %45 = vector.multi_reduction <add>, %44, %cst_27 [0] : vector<32x128xf32> to vector<128xf32>
      %46 = vector.shape_cast %45 : vector<128xf32> to vector<1x128xf32>
      %47 = arith.addf %43, %46 : vector<1x128xf32>
      %c0_28 = arith.constant 0 : index
      %c0_29 = arith.constant 0 : index
      %48 = vector.load %arg9[%c0_28, %c0_29] : memref<1x128xf32, #tpu.memory_space<vmem>>, vector<1x128xf32>
      tpu.vector_store %arg9[%c0_28, %c0_29], %47 {strides = array<i32>} : memref<1x128xf32, #tpu.memory_space<vmem>>, vector<1x128xf32>,
    } else {
    }
    %c3_i32_13 = arith.constant 3 : i32
    %25 = arith.cmpi eq, %arg0, %c3_i32_13 : i32
    %26 = arith.extui %25 : i1 to i32
    %c0_i32_14 = arith.constant 0 : i32
    %27 = arith.cmpi ne, %26, %c0_i32_14 : i32
    scf.if %27 {
      %28 = arith.addf %19, %8 : vector<32x128xf32>
      %c0_15 = arith.constant 0 : index
      %c0_16 = arith.constant 0 : index
      %29 = vector.load %arg6[%c0_15, %c0_16] : memref<32x128xf32, #tpu.memory_space<vmem>>, vector<32x128xf32>
      tpu.vector_store %arg6[%c0_15, %c0_16], %28 {strides = array<i32>} : memref<32x128xf32, #tpu.memory_space<vmem>>, vector<32x128xf32>,
    } else {
    }
    return
  }
  func.func @transform_0(%arg0: i32, %arg1: i32) -> (i32, i32) {
    %c0_i32 = arith.constant 0 : i32
    %c0_i32_0 = arith.constant 0 : i32
    return %arg1, %c0_i32 : i32, i32
  }
  func.func @transform_1(%arg0: i32, %arg1: i32) -> (i32, i32, i32) {
    %c0_i32 = arith.constant 0 : i32
    %c0_i32_0 = arith.constant 0 : i32
    %c0_i32_1 = arith.constant 0 : i32
    %c0_i32_2 = arith.constant 0 : i32
    return %c0_i32, %c0_i32_0, %c0_i32_1 : i32, i32, i32
  }
  func.func @transform_2(%arg0: i32, %arg1: i32) -> (i32, i32, i32) {
    %c0_i32 = arith.constant 0 : i32
    %c0_i32_0 = arith.constant 0 : i32
    %c0_i32_1 = arith.constant 0 : i32
    %c0_i32_2 = arith.constant 0 : i32
    return %c0_i32, %c0_i32_0, %c0_i32_1 : i32, i32, i32
  }
  func.func @transform_3(%arg0: i32, %arg1: i32) -> (i32, i32, i32) {
    %c0_i32 = arith.constant 0 : i32
    %c0_i32_0 = arith.constant 0 : i32
    %c0_i32_1 = arith.constant 0 : i32
    %c0_i32_2 = arith.constant 0 : i32
    return %c0_i32, %c0_i32_0, %c0_i32_1 : i32, i32, i32
  }
  func.func @transform_4(%arg0: i32, %arg1: i32) -> (i32, i32) {
    %c0_i32 = arith.constant 0 : i32
    %c0_i32_0 = arith.constant 0 : i32
    return %arg1, %c0_i32 : i32, i32
  }
}

</mosaic_0001>

<llo_original>
// kernel: tpu_custom_call.1
$region0: #{tpu_custom_call.1}
  #allocation0 [shape = 'u32[]', space=smem, size = 0x4, offset = 0x4, fixed_abs, tag = 'smem constant byte address 0x4 - core index']
  #allocation1 [shape = 'u32[144,128]{1,0:T(1,128)}', space=vmem, size = 0x12000, scoped, tag = 'internal scratch']
  #allocation2 [shape = 'f32[4,32,128]{2,1,0:T(8,128)}', space=vmem, size = 0x10000, scoped, tag = 'scratch operand']
  #allocation3 [shape = 'f32[1,128]{1,0:T(1,128)}', space=vmem, size = 0x200, scoped, tag = 'scratch operand']
  #allocation4 [shape = 'f32[1,128]{1,0:T(1,128)}', space=vmem, size = 0x200, scoped, tag = 'scratch operand']
  #allocation5 [shape = 'f32[1,128]{1,0:T(1,128)}', space=vmem, size = 0x200, scoped, tag = 'scratch operand']
  #allocation6 [shape = 'f32[1,128]{1,0:T(1,128)}', space=vmem, size = 0x200, scoped, tag = 'scratch operand']
  %s0 = inlined_call_operand.hbm [shape: f32[128,128], index: 0, kind: input, shape index: {}]
  %s1 = inlined_call_operand.hbm [shape: bf16[3,128,128], index: 1, kind: input, shape index: {}]
  %s2 = inlined_call_operand.vmem [shape: f32[3,1,128], index: 2, kind: input, shape index: {}]
  %s3 = inlined_call_operand.vmem [shape: f32[3,1,128], index: 3, kind: input, shape index: {}]
  %s4 = inlined_call_operand.hbm [shape: f32[128,128], index: 4, kind: output, shape index: {}]
  %s5 = sld [smem:[#allocation0]]
  $region73: #{tpu_custom_call.1} parent=0
    _
  %s7 = ssub.s32 1, %s5
  %s8 = scalar_select 0, %s7, %s5
  $region1: #{tpu_custom_call.1} parent=0
    #allocation7 [shape = 'u8[32768]{0}', space=vmem, size = 0x8000, scoped, tag = 'input window, operand 0']
    #allocation8 [shape = 's32[2]{0}', space=sflag, size = 0x8, scoped, tag = 'scoped memory for tpu_custom_call.1']
    #allocation9 [shape = 's32[2]{0}', space=sflag, size = 0x8, scoped, tag = 'scoped memory for tpu_custom_call.1']
    #allocation10 [shape = 'u8[98304]{0}', space=vmem, size = 0x18000, scoped, tag = 'input window, operand 1, single buffered']
    #allocation11 [shape = 's32[1]{0}', space=sflag, size = 0x4, scoped, tag = 'scoped memory for tpu_custom_call.1']
    #allocation12 [shape = 'u8[32768]{0}', space=vmem, size = 0x8000, scoped, tag = 'output window, operand 0']
    %9 = vsyncpa [#allocation8], 0
    %s10 = scalar_lea.sflag [#allocation8], 1
    %11 = vsyncpa %s10, 0
    %12 = vsyncpa [#allocation11], 0
    %13 = vsyncpa [#allocation9], 0
    %s14 = scalar_lea.sflag [#allocation9], 1
    %15 = vsyncpa %s14, 0
    loop: start=0, step=1, limit=18
    $region2: #{tpu_custom_call.1} parent=1 // loop_pre_header
      _
    $region3: #{tpu_custom_call.1} parent=1 // loop_header
      %s17 = sphi 0, %s21
      %p18 = scmp.ge.s32.totalorder %s17, 18
      %s24 = sphi 0, %s36
      %s25 = sphi 0, %s32
      %s26 = sphi 0, %s24
      %s27 = sphi 0, %s25
      %s28 = sphi 0, %s26
      %s29 = sphi 0, %s27
      %s39 = sphi 0, %s41
      %s42 = sphi 0, %s39
      %s43 = sphi 0, %s42
      %s59 = sphi 0, %s43
      %s63 = sphi 0, %s63
      %s65 = sphi 0, %s63
      %s66 = sphi 0, %s65
      %s80 = sphi 0, %s66
      %s84 = sphi 0, %s84
      %s86 = sphi 0, %s84
      %s87 = sphi 0, %s86
      %s101 = sphi 0, %s87
      %s105 = sphi 0, %s105
      %s107 = sphi 0, %s105
      %s108 = sphi 0, %s107
      %s122 = sphi 0, %s108
      %s128 = sphi 0, %s130
      %s131 = sphi 0, %s128
      %s132 = sphi 0, %s131
      %s148 = sphi 0, %s132
    $region4: #{tpu_custom_call.1} parent=1 // loop_header_branch
      %20 = sbr.rel (%p18) target = $region8
    $region5: #{tpu_custom_call.1} parent=1 // loop_body
      %s22 = ssub.s32 %s17, 1
      %s23 = ssub.s32 %s17, 2
      %s30 = sadd.s32 1, %s25
      %p31 = scmp.ge.s32.totalorder %s30, 4
      %s32 = scalar_select %p31, 0, %s30
      %s33 = sadd.s32 1, %s24
      %s34 = scalar_select %p31, %s33, %s24
      %p35 = scmp.ge.s32.totalorder %s34, 4
      %s36 = scalar_select %p35, 0, %s34
      %s37 = ssub.s32 %s25, %s32
      %p38 = scmp.eq.s32.totalorder %s37, 0
      %s40 = sadd.s32 %s39, 1
      %s41 = scalar_select %p38, %s39, %s40
      %p44 = pneg %p38
      %p45 = scmp.eq.s32.totalorder %s17, 15
      %p46 = por %p44, %p45
      %p47 = scmp.ne.s32.totalorder %s39, %s42
      %p48 = scmp.eq.s32.totalorder %s17, 0
      %p49 = por %p47, %p48
      %p50 = scmp.ne.s32.totalorder %s39, %s42
      %p51 = scmp.eq.s32.totalorder %s22, 15
      %p52 = por %p50, %p51
      %p53 = scmp.ne.s32.totalorder %s42, %s43
      %p54 = scmp.eq.s32.totalorder %s22, 0
      %p55 = por %p53, %p54
      %p56 = scmp.ne.s32.totalorder %s42, %s43
      %p57 = scmp.eq.s32.totalorder %s23, 15
      %p58 = por %p56, %p57
      %p60 = scmp.ne.s32.totalorder %s43, %s59
      %p61 = scmp.eq.s32.totalorder %s23, 0
      %p62 = por %p60, %p61
      %s64 = sadd.s32 %s63, 1
      %p67 = scmp.eq.s32.totalorder %s17, 15
      %p68 = scmp.ne.s32.totalorder %s63, %s65
      %p69 = scmp.eq.s32.totalorder %s17, 0
      %p70 = por %p68, %p69
      %p71 = scmp.ne.s32.totalorder %s63, %s65
      %p72 = scmp.eq.s32.totalorder %s22, 15
      %p73 = por %p71, %p72
      %p74 = scmp.ne.s32.totalorder %s65, %s66
      %p75 = scmp.eq.s32.totalorder %s22, 0
      %p76 = por %p74, %p75
      %p77 = scmp.ne.s32.totalorder %s65, %s66
      %p78 = scmp.eq.s32.totalorder %s23, 15
      %p79 = por %p77, %p78
      %p81 = scmp.ne.s32.totalorder %s66, %s80
      %p82 = scmp.eq.s32.totalorder %s23, 0
      %p83 = por %p81, %p82
      %s85 = sadd.s32 %s84, 1
      %p88 = scmp.eq.s32.totalorder %s17, 15
      %p89 = scmp.ne.s32.totalorder %s84, %s86
      %p90 = scmp.eq.s32.totalorder %s17, 0
      %p91 = por %p89, %p90
      %p92 = scmp.ne.s32.totalorder %s84, %s86
      %p93 = scmp.eq.s32.totalorder %s22, 15
      %p94 = por %p92, %p93
      %p95 = scmp.ne.s32.totalorder %s86, %s87
      %p96 = scmp.eq.s32.totalorder %s22, 0
      %p97 = por %p95, %p96
      %p98 = scmp.ne.s32.totalorder %s86, %s87
      %p99 = scmp.eq.s32.totalorder %s23, 15
      %p100 = por %p98, %p99
      %p102 = scmp.ne.s32.totalorder %s87, %s101
      %p103 = scmp.eq.s32.totalorder %s23, 0
      %p104 = por %p102, %p103
      %s106 = sadd.s32 %s105, 1
      %p109 = scmp.eq.s32.totalorder %s17, 15
      %p110 = scmp.ne.s32.totalorder %s105, %s107
      %p111 = scmp.eq.s32.totalorder %s17, 0
      %p112 = por %p110, %p111
      %p113 = scmp.ne.s32.totalorder %s105, %s107
      %p114 = scmp.eq.s32.totalorder %s22, 15
      %p115 = por %p113, %p114
      %p116 = scmp.ne.s32.totalorder %s107, %s108
      %p117 = scmp.eq.s32.totalorder %s22, 0
      %p118 = por %p116, %p117
      %p119 = scmp.ne.s32.totalorder %s107, %s108
      %p120 = scmp.eq.s32.totalorder %s23, 15
      %p121 = por %p119, %p120
      %p123 = scmp.ne.s32.totalorder %s108, %s122
      %p124 = scmp.eq.s32.totalorder %s23, 0
      %p125 = por %p123, %p124
      %s126 = ssub.s32 %s25, %s32
      %p127 = scmp.eq.s32.totalorder %s126, 0
      %s129 = sadd.s32 %s128, 1
      %s130 = scalar_select %p127, %s128, %s129
      %p133 = pneg %p127
      %p134 = scmp.eq.s32.totalorder %s17, 15
      %p135 = por %p133, %p134
      %p136 = scmp.ne.s32.totalorder %s128, %s131
      %p137 = scmp.eq.s32.totalorder %s17, 0
      %p138 = por %p136, %p137
      %p139 = scmp.ne.s32.totalorder %s128, %s131
      %p140 = scmp.eq.s32.totalorder %s22, 15
      %p141 = por %p139, %p140
      %p142 = scmp.ne.s32.totalorder %s131, %s132
      %p143 = scmp.eq.s32.totalorder %s22, 0
      %p144 = por %p142, %p143
      %p145 = scmp.ne.s32.totalorder %s131, %s132
      %p146 = scmp.eq.s32.totalorder %s23, 15
      %p147 = por %p145, %p146
      %p149 = scmp.ne.s32.totalorder %s132, %s148
      %p150 = scmp.eq.s32.totalorder %s23, 0
      %p151 = por %p149, %p150
      %p152 = scmp.le.s32.totalorder 1, %s17
      %p153 = scmp.lt.s32.totalorder %s17, 17
      %p154 = pnand %p152, %p153
      %p155 = pneg %p154
      // Predicated region
      $region9: #{tpu_custom_call.1} parent=5 // pred_check
        _
      $region10: #{tpu_custom_call.1} parent=5 // pred_check_branch
        %157 = sbr.rel (%p154) target = $region12
      $region11: #{tpu_custom_call.1} parent=5 // pred_region
        %s158 = ssub.s32 %s17, 1
        // Predicated region
        $region13: #{tpu_custom_call.1} parent=11 // pred_check
          %p159 = pneg %p76
        $region14: #{tpu_custom_call.1} parent=11 // pred_check_branch
          %161 = sbr.rel (%p159) target = $region16
        $region15: #{tpu_custom_call.1} parent=11 // pred_region
          %s163 = ssub.s32 3072, 3072
          %164 = vsyncadd [#allocation11], %s163
          %s165 = sshll.u32 [#allocation10], 4
          %s166 = int_to_ptr.vmem [resolvable:$true] %s165
          %171 = dma.hbm_to_vmem [thread:$0]  %s1, 3072, %s166, [#allocation11], 64, 64, 4
        $region16: #{tpu_custom_call.1} parent=11 // pred_fallthru
          _
        // Predicated region
        $region17: #{tpu_custom_call.1} parent=11 // pred_check
          %p172 = pneg %p97
        $region18: #{tpu_custom_call.1} parent=11 // pred_check_branch
          %174 = sbr.rel (%p172) target = $region20
        $region19: #{tpu_custom_call.1} parent=11 // pred_region
          _
        $region20: #{tpu_custom_call.1} parent=11 // pred_fallthru
          _
        // Predicated region
        $region21: #{tpu_custom_call.1} parent=11 // pred_check
          %p175 = pneg %p118
        $region22: #{tpu_custom_call.1} parent=11 // pred_check_branch
          %177 = sbr.rel (%p175) target = $region24
        $region23: #{tpu_custom_call.1} parent=11 // pred_region
          _
        $region24: #{tpu_custom_call.1} parent=11 // pred_fallthru
          _
      $region12: #{tpu_custom_call.1} parent=5 // pred_fallthru
        _
      %p178 = scmp.lt.s32.totalorder %s17, 16
      // Predicated region
      $region25: #{tpu_custom_call.1} parent=5 // pred_check
        %p179 = pneg %p178
      $region26: #{tpu_custom_call.1} parent=5 // pred_check_branch
        %181 = sbr.rel (%p179) target = $region28
      $region27: #{tpu_custom_call.1} parent=5 // pred_region
        // Predicated region
        $region29: #{tpu_custom_call.1} parent=27 // pred_check
          %p182 = pneg %p49
        $region30: #{tpu_custom_call.1} parent=27 // pred_check_branch
          %184 = sbr.rel (%p182) target = $region32
        $region31: #{tpu_custom_call.1} parent=27 // pred_region
          %s185 = sand.u32 %s39, 1
          %s186 = scalar_lea.sflag [#allocation8], %s185
          %s187 = sand.u32 %s39, 1
          %s188 = smul.addr %s187, 32
          %s189 = scalar_lea.vmem [#allocation7], %s188
          %s190 = smul.u32 4, %s25
          %s192 = ssub.s32 512, 512
          %193 = vsyncadd %s186, %s192
          %s194 = smul.addr %s190, 128
          %s195 = scalar_lea.hbm %s0, %s194
          %s196 = sshll.u32 %s189, 4
          %s197 = int_to_ptr.vmem [resolvable:$true] %s196
          %202 = dma.hbm_to_vmem [thread:$0]  %s195, 512, %s197, %s186, 128, 128, 8
        $region32: #{tpu_custom_call.1} parent=27 // pred_fallthru
          _
      $region28: #{tpu_custom_call.1} parent=5 // pred_fallthru
        _
      %p203 = scmp.le.s32.totalorder 1, %s17
      %p204 = scmp.lt.s32.totalorder %s17, 17
      %p205 = pnand %p203, %p204
      %p206 = pneg %p205
      // Predicated region
      $region33: #{tpu_custom_call.1} parent=5 // pred_check
        _
      $region34: #{tpu_custom_call.1} parent=5 // pred_check_branch
        %208 = sbr.rel (%p205) target = $region36
      $region35: #{tpu_custom_call.1} parent=5 // pred_region
        %s209 = ssub.s32 %s17, 1
        %s210 = sand.u32 %s42, 1
        %s211 = scalar_lea.sflag [#allocation8], %s210
        %s212 = sand.u32 %s42, 1
        %s213 = smul.addr %s212, 32
        %s214 = scalar_lea.vmem [#allocation7], %s213
        // Predicated region
        $region37: #{tpu_custom_call.1} parent=35 // pred_check
          %p215 = pneg %p55
        $region38: #{tpu_custom_call.1} parent=35 // pred_check_branch
          %217 = sbr.rel (%p215) target = $region40
        $region39: #{tpu_custom_call.1} parent=35 // pred_region
          %218 = dma.done %s211, 512
        $region40: #{tpu_custom_call.1} parent=35 // pred_fallthru
          _
        // Predicated region
        $region41: #{tpu_custom_call.1} parent=35 // pred_check
          %p219 = pneg %p76
        $region42: #{tpu_custom_call.1} parent=35 // pred_check_branch
          %221 = sbr.rel (%p219) target = $region44
        $region43: #{tpu_custom_call.1} parent=35 // pred_region
          %222 = dma.done [#allocation11], 3072
        $region44: #{tpu_custom_call.1} parent=35 // pred_fallthru
          _
        %s223 = sand.u32 %s42, 1
        %s224 = scalar_lea.sflag [#allocation8], %s223
        %s225 = sand.u32 %s42, 1
        %s226 = smul.addr %s225, 32
        %s227 = scalar_lea.vmem [#allocation7], %s226
        %p228 = pneg %p55
        %p229 = pneg %p52
        %p230 = pneg %p76
        %p231 = pneg %p73
        %p232 = pneg %p97
        %p233 = pneg %p94
        %p234 = pneg %p118
        %p235 = pneg %p115
        %p236 = pneg %p144
        %p237 = pneg %p141
        %s238 = sand.u32 %s131, 1
        %s239 = scalar_lea.sflag [#allocation9], %s238
        %s240 = sand.u32 %s131, 1
        %s241 = smul.addr %s240, 32
        %s242 = scalar_lea.vmem [#allocation12], %s241
        %s243 = smul.u32 4, %s27
        %s244 = smul.u32 4, %s27
        %p246 = scmp.eq.s32.totalorder %s27, 0
        %p247 = scmp.gt.s32.totalorder %s26, 0
        %p248 = pnand %p246, %p247
        %p249 = pneg %p248
        // Predicated region
        $region45: #{tpu_custom_call.1} parent=35 // pred_check
          _
        $region46: #{tpu_custom_call.1} parent=35 // pred_check_branch
          %251 = sbr.rel (%p248) target = $region48
        $region47: #{tpu_custom_call.1} parent=35 // pred_region
          %s252 = ssub.s32 %s26, 1
          %p253 = scmp.gt.s32.totalorder %s252, 0
          %s254 = scalar_select %p253, %s252, 0
          %v255 = vld [vmem:[#allocation3] sm:$0x1]
          %v256 = vmul.f32 %v255, 0.0078125
          %v257 = vld [vmem:[#allocation4] sm:$0x1]
          %v258 = vmul.f32 %v257, 0.0078125
          %v259 = vmul.f32 %v256, %v256
          %v260 = vsub.f32 %v258, %v259
          %s261 = scalar_lea.vmem %s2, %s254
          %v262 = vld [vmem:[%s261] sm:$0x1]
          %v263 = vadd.f32 %v260, 1e-05
          %v264 = vrsqrt.pop %v263
          %v265 = vmul.f32 %v262, %v264
          %266 = vst [vmem:[#allocation5] sm:$0x1] %v265
          %s267 = scalar_lea.vmem %s3, %s254
          %v268 = vld [vmem:[%s267] sm:$0x1]
          %v269 = vmul.f32 %v256, %v265
          %v270 = vsub.f32 %v268, %v269
          %271 = vst [vmem:[#allocation6] sm:$0x1] %v270
        $region48: #{tpu_custom_call.1} parent=35 // pred_fallthru
          _
        // Predicated region
        $region49: #{tpu_custom_call.1} parent=35 // pred_check
          %p272 = pneg %p246
        $region50: #{tpu_custom_call.1} parent=35 // pred_check_branch
          %274 = sbr.rel (%p272) target = $region52
        $region51: #{tpu_custom_call.1} parent=35 // pred_region
          %275 = vst [vmem:[#allocation3] sm:$0x1] 0.0
          %276 = vst [vmem:[#allocation4] sm:$0x1] 0.0
        $region52: #{tpu_custom_call.1} parent=35 // pred_fallthru
          _
        %v277 = vld [vmem:[%s214] sm:$0xff]
        %v278 = vld [vmem:[%s214 + $0x8] sm:$0xff]
        %v279 = vld [vmem:[%s214 + $0x10] sm:$0xff]
        %v280 = vld [vmem:[%s214 + $0x18] sm:$0xff]
        %s281 = smul.u32 %s27, 32
        %s282 = scalar_lea.vmem [#allocation2], %s281
        %v283 = vld [vmem:[%s282] sm:$0xff]
        %v284 = vld [vmem:[%s282 + $0x8] sm:$0xff]
        %v285 = vld [vmem:[%s282 + $0x10] sm:$0xff]
        %v286 = vld [vmem:[%s282 + $0x18] sm:$0xff]
        %v287 = vld [vmem:[#allocation5] sm:$0x1]
        %v289 = vlaneseq
        %v290 = vshrl.u32 %v289, 7
        %v291 = vsub.s32 0, %v290
        %v292 = vrot.slane %v287, %v291
        %v294 = vmul.f32 %v283, %v292
        %v295 = vmul.f32 %v284, %v292
        %v296 = vmul.f32 %v285, %v292
        %v297 = vmul.f32 %v286, %v292
        %v298 = vld [vmem:[#allocation6] sm:$0x1]
        %v300 = vlaneseq
        %v301 = vshrl.u32 %v300, 7
        %v302 = vsub.s32 0, %v301
        %v303 = vrot.slane %v298, %v302
        %v305 = vadd.f32 %v294, %v303
        %v306 = vadd.f32 %v295, %v303
        %v307 = vadd.f32 %v296, %v303
        %v308 = vadd.f32 %v297, %v303
        %v309 = vmax.f32 %v305, 0.0
        %v310 = vmax.f32 %v306, 0.0
        %v311 = vmax.f32 %v307, 0.0
        %v312 = vmax.f32 %v308, 0.0
        %p313 = scmp.eq.s32.totalorder %s26, 0
        %s314 = scalar_select %p313, 1, 0
        %v315 = vstv %s314
        %vm316 = vcmp.eq.s32.totalorder %v315, 1
        %v317 = vsel %vm316, %v277, %v309
        %v318 = vsel %vm316, %v278, %v310
        %v319 = vsel %vm316, %v279, %v311
        %v320 = vsel %vm316, %v280, %v312
        %p321 = scmp.lt.s32.totalorder %s26, 3
        // Predicated region
        $region53: #{tpu_custom_call.1} parent=35 // pred_check
          %p322 = pneg %p321
        $region54: #{tpu_custom_call.1} parent=35 // pred_check_branch
          %324 = sbr.rel (%p322) target = $region56
        $region55: #{tpu_custom_call.1} parent=35 // pred_region
          %p325 = scmp.lt.s32.totalorder %s26, 2
          %s326 = scalar_select %p325, %s26, 2
          %v327 = vpack.c.bf16 %v318, %v317
          %v328 = vpack.c.bf16 %v320, %v319
          %s329 = smul.u32 %s326, 16
          %s330 = smul.addr %s329, 4
          %s331 = scalar_lea.vmem [#allocation10], %s330
          %v332 = vld [vmem:[%s331] sm:$0xf]
          %v333 = vld [vmem:[%s331 + $0x4] sm:$0xf]
          %v334 = vld [vmem:[%s331 + $0x8] sm:$0xf]
          %v335 = vld [vmem:[%s331 + $0xc] sm:$0xf]
          %v336 = vld [vmem:[%s331 + $0x10] sm:$0xf]
          %v337 = vld [vmem:[%s331 + $0x14] sm:$0xf]
          %v338 = vld [vmem:[%s331 + $0x18] sm:$0xf]
          %v339 = vld [vmem:[%s331 + $0x1c] sm:$0xf]
          %v340 = vld [vmem:[%s331 + $0x20] sm:$0xf]
          %v341 = vld [vmem:[%s331 + $0x24] sm:$0xf]
          %v342 = vld [vmem:[%s331 + $0x28] sm:$0xf]
          %v343 = vld [vmem:[%s331 + $0x2c] sm:$0xf]
          %v344 = vld [vmem:[%s331 + $0x30] sm:$0xf]
          %v345 = vld [vmem:[%s331 + $0x34] sm:$0xf]
          %v346 = vld [vmem:[%s331 + $0x38] sm:$0xf]
          %v347 = vld [vmem:[%s331 + $0x3c] sm:$0xf]
          %v364 = vunpack.c.l.b16 %v332
          %v365 = vunpack.c.l.b16 %v333
          %v366 = vunpack.c.l.b16 %v334
          %v367 = vunpack.c.l.b16 %v335
          %v368 = vunpack.c.l.b16 %v336
          %v369 = vunpack.c.l.b16 %v337
          %v370 = vunpack.c.l.b16 %v338
          %v371 = vunpack.c.l.b16 %v339
          %v372 = vunpack.c.l.b16 %v340
          %v373 = vunpack.c.l.b16 %v341
          %v374 = vunpack.c.l.b16 %v342
          %v375 = vunpack.c.l.b16 %v343
          %v376 = vunpack.c.l.b16 %v344
          %v377 = vunpack.c.l.b16 %v345
          %v378 = vunpack.c.l.b16 %v346
          %v379 = vunpack.c.l.b16 %v347
          %v380 = vpack.c.b16 %v365, %v364
          %v381 = vpack.c.b16 %v367, %v366
          %v382 = vpack.c.b16 %v369, %v368
          %v383 = vpack.c.b16 %v371, %v370
          %v384 = vpack.c.b16 %v373, %v372
          %v385 = vpack.c.b16 %v375, %v374
          %v386 = vpack.c.b16 %v377, %v376
          %v387 = vpack.c.b16 %v379, %v378
          %396 = vmatprep.subr.bf16.mxu0 0
          %397 = vmatpush1.bf16.xpose.msra.mxu0 %v380
          %398 = vmatprep.subr.bf16.mxu0 0
          %399 = vmatpush1.bf16.xpose.msra.mxu0 %v381
          %400 = vmatprep.subr.bf16.mxu0 0
          %401 = vmatpush1.bf16.xpose.msra.mxu0 %v382
          %402 = vmatprep.subr.bf16.mxu0 0
          %403 = vmatpush1.bf16.xpose.msra.mxu0 %v383
          %404 = vmatprep.subr.bf16.mxu0 0
          %405 = vmatpush1.bf16.xpose.msra.mxu0 %v384
          %406 = vmatprep.subr.bf16.mxu0 0
          %407 = vmatpush1.bf16.xpose.msra.mxu0 %v385
          %408 = vmatprep.subr.bf16.mxu0 0
          %409 = vmatpush1.bf16.xpose.msra.mxu0 %v386
          %410 = vmatprep.subr.bf16.mxu0 0
          %411 = vmatpush1.bf16.xpose.msra.mxu0 %v387
          %412 = vmatprep.subr.bf16.mxu0 0
          %413 = vmatpush1.bf16.xpose.msra.mxu0 0
          %414 = vmatprep.subr.bf16.mxu0 0
          %415 = vmatpush1.bf16.xpose.msra.mxu0 0
          %416 = vmatprep.subr.bf16.mxu0 0
          %417 = vmatpush1.bf16.xpose.msra.mxu0 0
          %418 = vmatprep.subr.bf16.mxu0 0
          %419 = vmatpush1.bf16.xpose.msra.mxu0 0
          %420 = vmatprep.subr.bf16.mxu0 0
          %421 = vmatpush1.bf16.xpose.msra.mxu0 0
          %422 = vmatprep.subr.bf16.mxu0 0
          %423 = vmatpush1.bf16.xpose.msra.mxu0 0
          %424 = vmatprep.subr.bf16.mxu0 0
          %425 = vmatpush1.bf16.xpose.msra.mxu0 0
          %426 = vmatprep.subr.bf16.mxu0 0
          %427 = vmatpush1.bf16.xpose.msra.mxu0 0
          %428 = vmatprep.mubr.bf16.mxu0 0
          %429 = vmatmul.mubr.bf16.gmra.mrb[0].mxu0 %v327
          %v430 = vpop.f32.mrb[0].mxu0
          %v431 = vadd.f32 0.0, %v430
          %v432 = vpop.f32.mrb[0].mxu0
          %v433 = vpop.f32.mrb[0].mxu0
          %v434 = vadd.f32 0.0, %v433
          %v435 = vpop.f32.mrb[0].mxu0
          %436 = vmatprep.mubr.bf16.mxu0 0
          %437 = vmatmul.mubr.bf16.gmra.mrb[0].mxu0 %v328
          %v438 = vpop.f32.mrb[0].mxu0
          %v439 = vadd.f32 0.0, %v438
          %v440 = vpop.f32.mrb[0].mxu0
          %v441 = vpop.f32.mrb[0].mxu0
          %v442 = vadd.f32 0.0, %v441
          %v443 = vpop.f32.mrb[0].mxu0
          %444 = vdwg.mxu0
          %445 = vst [vmem:[%s282] sm:$0xff] %v431
          %446 = vst [vmem:[%s282 + $0x8] sm:$0xff] %v434
          %447 = vst [vmem:[%s282 + $0x10] sm:$0xff] %v439
          %448 = vst [vmem:[%s282 + $0x18] sm:$0xff] %v442
          %v449 = vld [vmem:[#allocation3] sm:$0x1]
          %v450 = vadd.f32 %v431, %v434
          %v451 = vadd.f32 %v450, %v439
          %v452 = vadd.f32 %v451, %v442
          %v453 = vrot.slane %v452, 4
          %v454 = vadd.f32 %v452, %v453
          %v455 = vrot.slane %v454, 2
          %v456 = vadd.f32 %v454, %v455
          %v457 = vrot.slane %v456, 1
          %v458 = vadd.f32 %v456, %v457
          %v459 = vadd.f32 %v449, %v458
          %460 = vst [vmem:[#allocation3] sm:$0x1] %v459
          %v461 = vld [vmem:[#allocation4] sm:$0x1]
          %v462 = vmul.f32 %v431, %v431
          %v463 = vmul.f32 %v434, %v434
          %v464 = vmul.f32 %v439, %v439
          %v465 = vmul.f32 %v442, %v442
          %v466 = vadd.f32 %v462, %v463
          %v467 = vadd.f32 %v466, %v464
          %v468 = vadd.f32 %v467, %v465
          %v469 = vrot.slane %v468, 4
          %v470 = vadd.f32 %v468, %v469
          %v471 = vrot.slane %v470, 2
          %v472 = vadd.f32 %v470, %v471
          %v473 = vrot.slane %v472, 1
          %v474 = vadd.f32 %v472, %v473
          %v475 = vadd.f32 %v461, %v474
          %476 = vst [vmem:[#allocation4] sm:$0x1] %v475
        $region56: #{tpu_custom_call.1} parent=35 // pred_fallthru
          _
        %p477 = scmp.eq.s32.totalorder %s26, 3
        // Predicated region
        $region57: #{tpu_custom_call.1} parent=35 // pred_check
          %p478 = pneg %p477
        $region58: #{tpu_custom_call.1} parent=35 // pred_check_branch
          %480 = sbr.rel (%p478) target = $region60
        $region59: #{tpu_custom_call.1} parent=35 // pred_region
          %v481 = vadd.f32 %v309, %v277
          %v482 = vadd.f32 %v310, %v278
          %v483 = vadd.f32 %v311, %v279
          %v484 = vadd.f32 %v312, %v280
          %485 = vst [vmem:[%s242] sm:$0xff] %v481
          %486 = vst [vmem:[%s242 + $0x8] sm:$0xff] %v482
          %487 = vst [vmem:[%s242 + $0x10] sm:$0xff] %v483
          %488 = vst [vmem:[%s242 + $0x18] sm:$0xff] %v484
        $region60: #{tpu_custom_call.1} parent=35 // pred_fallthru
          _
        %s489 = sand.u32 %s131, 1
        %s490 = scalar_lea.sflag [#allocation9], %s489
        %s491 = sand.u32 %s131, 1
        %s492 = smul.addr %s491, 32
        %s493 = scalar_lea.vmem [#allocation12], %s492
        // Predicated region
        $region61: #{tpu_custom_call.1} parent=35 // pred_check
          %p494 = pneg %p141
        $region62: #{tpu_custom_call.1} parent=35 // pred_check_branch
          %496 = sbr.rel (%p494) target = $region64
        $region63: #{tpu_custom_call.1} parent=35 // pred_region
          %s497 = smul.u32 4, %s27
          %s499 = ssub.s32 512, 512
          %500 = vsyncadd %s490, %s499
          %s501 = smul.addr %s497, 128
          %s502 = scalar_lea.hbm %s4, %s501
          %s503 = sshll.u32 %s493, 4
          %s504 = int_to_ptr.vmem [resolvable:$true] %s503
          %509 = dma.vmem_to_hbm [thread:$0]  %s504, 512, %s502, %s490, 128, 128, 8
        $region64: #{tpu_custom_call.1} parent=35 // pred_fallthru
          _
      $region36: #{tpu_custom_call.1} parent=5 // pred_fallthru
        _
      %p510 = scmp.le.s32.totalorder 2, %s17
      // Predicated region
      $region65: #{tpu_custom_call.1} parent=5 // pred_check
        %p511 = pneg %p510
      $region66: #{tpu_custom_call.1} parent=5 // pred_check_branch
        %513 = sbr.rel (%p511) target = $region68
      $region67: #{tpu_custom_call.1} parent=5 // pred_region
        %s514 = ssub.s32 %s17, 2
        // Predicated region
        $region69: #{tpu_custom_call.1} parent=67 // pred_check
          %p515 = pneg %p147
        $region70: #{tpu_custom_call.1} parent=67 // pred_check_branch
          %517 = sbr.rel (%p515) target = $region72
        $region71: #{tpu_custom_call.1} parent=67 // pred_region
          %s518 = sand.u32 %s132, 1
          %s519 = scalar_lea.sflag [#allocation9], %s518
          %s520 = sand.u32 %s132, 1
          %s521 = smul.addr %s520, 32
          %s522 = scalar_lea.vmem [#allocation12], %s521
          %523 = dma.done %s519, 512
        $region72: #{tpu_custom_call.1} parent=67 // pred_fallthru
          _
      $region68: #{tpu_custom_call.1} parent=5 // pred_fallthru
        _
    $region6: #{tpu_custom_call.1} parent=1 // loop_footer
      %s21 = sadd.s32 1, %s17
    $region7: #{tpu_custom_call.1} parent=1 // loop_footer_branch
      %16 = sbr.rel target = $region3
    $region8: #{tpu_custom_call.1} parent=1 // loop_exit
      _
    %524 = vsyncpa [#allocation8], 1
    %s525 = scalar_lea.sflag [#allocation8], 1
    %526 = vsyncpa %s525, 1
    %527 = vsyncpa [#allocation11], 1
    %528 = vsyncpa [#allocation9], 1
    %s529 = scalar_lea.sflag [#allocation9], 1
    %530 = vsyncpa %s529, 1

</llo_original>
